<compile_context>
chip_gen: v5e
topology: v5e:2x2
jax: 0.10.0
libtpu: 0.0.40
codegen_flags: <defaults>
</compile_context>

<pallas_src>
import functools

import jax
import jax.numpy as jnp
from jax.experimental import pallas as pl
from jax.experimental.pallas import tpu as pltpu


def _round_up(x: int, m: int) -> int:
    return (x + m - 1) // m * m


# ---------------------------------------------------------------------------
# Kernel bodies
# ---------------------------------------------------------------------------


def _layernorm_lane(v, gamma, beta, eps):
    """LayerNorm over the (lane-dense) last axis of an f32 tile."""
    mu = jnp.mean(v, axis=-1, keepdims=True)
    xc = v - mu
    var = jnp.mean(xc * xc, axis=-1, keepdims=True)
    return xc * jax.lax.rsqrt(var + eps) * gamma + beta


def _segment_mean(v, seg_ones, inv_d):
    """Mean over each contiguous d-lane segment of the last axis.

    Computed as (v @ seg_ones) * (1/d) where seg_ones is a 0/1 block-diagonal
    indicator.  v is split into a bf16-exact high part plus a small residual
    so the result is f32-accurate even if the MXU truncates f32 operands.
    """
    hi = v.astype(jnp.bfloat16).astype(jnp.float32)
    lo = v - hi
    s = jnp.dot(hi, seg_ones, preferred_element_type=jnp.float32)
    s = s + jnp.dot(lo, seg_ones, preferred_element_type=jnp.float32)
    return s * inv_d


def _layernorm_packed(v, gamma, beta, eps, seg_ones, inv_d):
    mu = _segment_mean(v, seg_ones, inv_d)
    xc = v - mu
    var = _segment_mean(xc * xc, seg_ones, inv_d)
    return xc * jax.lax.rsqrt(var + eps) * gamma + beta


def _lin_kernel_std(x_ref, wt_ref, params_ref, o_ref, *,
                    do_ln_pre, do_ln_post, do_relu, eps):
    # x_ref: (ROW_TILE, D); wt_ref: (D, D) native dtype; params_ref: (8, D) f32.
    p = params_ref[...]
    bias, gpre, bpre, gpost, bpost = p[0:1], p[1:2], p[2:3], p[3:4], p[4:5]

    x = x_ref[...]
    if do_ln_pre:
        h = _layernorm_lane(x.astype(jnp.float32), gpre, bpre, eps)
        h = h.astype(x_ref.dtype)        # keep the MXU on the native-dtype path
    else:
        h = x

    y = jnp.dot(h, wt_ref[...], preferred_element_type=jnp.float32) + bias
    if do_ln_post:
        y = _layernorm_lane(y, gpost, bpost, eps)
    if do_relu:
        y = jnp.maximum(y, 0.0)
    o_ref[...] = y.astype(o_ref.dtype)


def _lin_kernel_packed(x_ref, wt_ref, params_ref, seg_ref, o_ref, *,
                       do_ln_pre, do_ln_post, do_relu, eps, inv_d):
    # Lane-packed: each row holds g = 128//d original rows along the lane axis.
    p = params_ref[...]
    bias, gpre, bpre, gpost, bpost = p[0:1], p[1:2], p[2:3], p[3:4], p[4:5]
    seg = seg_ref[...]

    x = x_ref[...]
    if do_ln_pre:
        h = _layernorm_packed(x.astype(jnp.float32), gpre, bpre, eps, seg, inv_d)
        h = h.astype(x_ref.dtype)
    else:
        h = x

    # wt_ref is block-diagonal (g copies of W^T), so this is g independent
    # per-row Linear layers in one lane-dense MXU pass.
    y = jnp.dot(h, wt_ref[...], preferred_element_type=jnp.float32) + bias
    if do_ln_post:
        y = _layernorm_packed(y, gpost, bpost, eps, seg, inv_d)
    if do_relu:
        y = jnp.maximum(y, 0.0)
    o_ref[...] = y.astype(o_ref.dtype)


# ---------------------------------------------------------------------------
# Wrapper
# ---------------------------------------------------------------------------


def _pick_row_tile(m_rows: int, cap: int) -> tuple[int, int]:
    """Choose (row_tile, padded_rows).

    Prefers MXU-friendly multiples (256, then 128, then 8) that divide m_rows
    so no pad + slice HBM round trip is needed; pads only as a last resort.
    """
    cap = max(8, cap)
    if m_rows <= cap:
        return m_rows, m_rows                     # single full-dim block
    for align in (256, 128, 8):
        t = (cap // align) * align
        while t >= align:
            if m_rows % t == 0:
                return t, m_rows
            t -= align
    t = max(8, (cap // 8) * 8)
    # TODO(synk): a masked final tile would avoid this pad + slice round trip.
    return t, _round_up(m_rows, t)


def lin_layer(x: jax.Array,
              weight: jax.Array,
              bias: jax.Array,
              gamma_pre: jax.Array | None = None,
              beta_pre: jax.Array | None = None,
              gamma_post: jax.Array | None = None,
              beta_post: jax.Array | None = None,
              *,
              do_layernorm_pre: bool = True,
              do_layernorm_post: bool = True,
              do_relu: bool = True,
              eps: float = 1e-5,
              row_tile: int | None = None,
              single_buffer_invariants: bool = True) -> jax.Array:
    """Pallas equivalent of LinLayer.forward.

    `weight` uses the PyTorch nn.Linear layout (out_features, in_features).
    The LayerNorm / ReLU stages are statically enabled via the do_* flags.
    """
    orig_shape = x.shape
    d = int(orig_shape[-1])
    m = 1
    for s in orig_shape[:-1]:
        m *= int(s)
    dtype = x.dtype
    itemsize = jnp.dtype(dtype).itemsize

    # Weight pre-transposed so the kernel computes x @ W^T directly (no cast).
    wt = jnp.asarray(weight, dtype).T                       # (d_in, d_out)

    def _vec(v, default):
        return jnp.asarray(default if v is None else v, jnp.float32).reshape(d)

    bias_v = _vec(bias, jnp.zeros((d,), jnp.float32))
    gpre_v = _vec(gamma_pre, jnp.ones((d,), jnp.float32))
    bpre_v = _vec(beta_pre, jnp.zeros((d,), jnp.float32))
    gpost_v = _vec(gamma_post, jnp.ones((d,), jnp.float32))
    bpost_v = _vec(beta_post, jnp.zeros((d,), jnp.float32))

    # ---- lane-dense repack for tiny feature dims (d < 128) ------------------
    g = 1
    if d < 128 and 128 % d == 0 and m % (128 // d) == 0:
        g = 128 // d
    d_eff = g * d
    m_rows = m // g

    x2 = x.reshape(m_rows, d_eff)
    if g > 1:
        wt_eff = jnp.kron(jnp.eye(g, dtype=dtype), wt)      # block-diagonal W^T
        bias_v, gpre_v, bpre_v, gpost_v, bpost_v = (
            jnp.tile(v, (g,)) for v in (bias_v, gpre_v, bpre_v, gpost_v, bpost_v))
        seg_ones = jnp.kron(jnp.eye(g, dtype=jnp.float32),
                            jnp.ones((d, d), jnp.float32))
    else:
        wt_eff = wt
        seg_ones = None

    # bias / gamma / beta packed into one (8, d_eff) sublane tile -> one DMA.
    params = jnp.zeros((8, d_eff), jnp.float32)
    for row, v in enumerate((bias_v, gpre_v, bpre_v, gpost_v, bpost_v)):
        params = params.at[row].set(v)

    # ---- VMEM-aware row-tile sizing ------------------------------------------
    try:
        vmem_cap = int(pltpu.get_tpu_info().vmem_capacity_bytes)
    except Exception:                       # no / unexpected TPU info at trace time
        vmem_cap = 64 * 1024 * 1024         # conservative (v7x-sized) default
    soft_limit = max(16 * 1024 * 1024, min(vmem_cap // 2, 96 * 1024 * 1024))

    # Resident operands (single-buffered): weight, packed params, segment mat.
    fixed = d_eff * d_eff * itemsize + 8 * d_eff * 4
    if seg_ones is not None:
        fixed += d_eff * d_eff * 4
    if not single_buffer_invariants:
        fixed *= 2
    # Per row: double-buffered in/out tiles plus ~6 f32 temporaries in the body.
    per_row = d_eff * (4 * itemsize + 24)
    avail = max(soft_limit - fixed - (2 << 20), per_row * 8)

    if row_tile is None:
        cap = max(8, min(avail // per_row, 4096))
        # Keep >= 2 (ideally 4) grid steps for big problems so v7x can shard the
        # "parallel" row axis across its two TensorCores.
        if m_rows >= 512:
            cap = min(cap, max(256, m_rows // 2))
        if m_rows >= 4096:
            cap = min(cap, max(512, m_rows // 4))
        row_tile, m_pad = _pick_row_tile(m_rows, cap)
    else:
        row_tile = max(1, min(int(row_tile), m_rows))
        m_pad = _round_up(m_rows, row_tile)

    vmem_limit = int(min(max(fixed + per_row * row_tile + (4 << 20),
                             32 * 1024 * 1024),
                         vmem_cap * 9 // 10))

    if m_pad != m_rows:
        # Zero rows are harmless: var + eps keeps rsqrt finite; sliced off below.
        x2 = jnp.pad(x2, ((0, m_pad - m_rows), (0, 0)))

    grid = (m_pad // row_tile,)

    ln_terms = int(do_layernorm_pre) + int(do_layernorm_post)
    n_dots = 1 + (4 * ln_terms if seg_ones is not None else 0)
    cost = pl.CostEstimate(
        flops=2 * m_pad * d_eff * d_eff * n_dots + 12 * m_pad * d_eff,
        transcendentals=ln_terms * m_pad,
        bytes_accessed=(2 * m_pad * d_eff) * itemsize
        + d_eff * d_eff * itemsize + 8 * d_eff * 4
        + (d_eff * d_eff * 4 if seg_ones is not None else 0),
    )

    if seg_ones is not None:
        kern = functools.partial(
            _lin_kernel_packed, do_ln_pre=do_layernorm_pre,
            do_ln_post=do_layernorm_post, do_relu=do_relu, eps=eps,
            inv_d=1.0 / d)
    else:
        kern = functools.partial(
            _lin_kernel_std, do_ln_pre=do_layernorm_pre,
            do_ln_post=do_layernorm_post, do_relu=do_relu, eps=eps)

    def _const_spec(shape, single_buffer):
        # Grid-invariant operand: keep it resident; single-buffer to save VMEM.
        if single_buffer:
            return pl.BlockSpec(shape, lambda i: (0, 0),
                                pipeline_mode=pl.Buffered(1))
        return pl.BlockSpec(shape, lambda i: (0, 0))

    def _call(single_buffer):
        in_specs = [pl.BlockSpec((row_tile, d_eff), lambda i: (i, 0)),   # x rows
                    _const_spec((d_eff, d_eff), single_buffer),          # W^T
                    _const_spec((8, d_eff), single_buffer)]              # params
        operands = [x2, wt_eff, params]
        if seg_ones is not None:
            in_specs.append(_const_spec((d_eff, d_eff), single_buffer))  # seg mat
            operands.append(seg_ones)
        return pl.pallas_call(
            kern,
            out_shape=jax.ShapeDtypeStruct((m_pad, d_eff), dtype),
            grid_spec=pltpu.PrefetchScalarGridSpec(
                num_scalar_prefetch=0,
                grid=grid,
                in_specs=in_specs,
                out_specs=pl.BlockSpec((row_tile, d_eff), lambda i: (i, 0)),
            ),
            compiler_params=pltpu.CompilerParams(
                dimension_semantics=("parallel",),
                vmem_limit_bytes=vmem_limit,
            ),
            cost_estimate=cost,
        )(*operands)

    try:
        out = _call(single_buffer_invariants)
    except Exception:
        if not single_buffer_invariants:
            raise
        out = _call(False)        # fall back to default double buffering

    if m_pad != m_rows:
        out = out[:m_rows]
    return out.reshape(orig_shape)


# ---------------------------------------------------------------------------
# Reference + self-test
# ---------------------------------------------------------------------------


def _reference(x, weight, bias, gamma_pre, beta_pre, gamma_post, beta_post,
               *, do_layernorm_pre, do_layernorm_post, do_relu, eps=1e-5):
    def ln(v, g, b):
        mu = jnp.mean(v, axis=-1, keepdims=True)
        var = jnp.mean((v - mu) ** 2, axis=-1, keepdims=True)
        return (v - mu) / jnp.sqrt(var + eps) * g + b

    h = ln(x, gamma_pre, beta_pre) if do_layernorm_pre else x
    y = h @ weight.T + bias
    if do_layernorm_post:
        y = ln(y, gamma_post, beta_post)
    if do_relu:
        y = jnp.maximum(y, 0.0)
    return y


if __name__ == "__main__":
    key = jax.random.PRNGKey(0)
    k_case1, k_par1, k_case2, k_par2 = jax.random.split(key, 4)

    def _make_params(k, dd):
        kw, kb, kg1, kb1, kg2, kb2 = jax.random.split(k, 6)
        w = jax.random.normal(kw, (dd, dd), jnp.float32) / jnp.sqrt(dd)
        b = 0.1 * jax.random.normal(kb, (dd,), jnp.float32)
        g1 = 1.0 + 0.1 * jax.random.normal(kg1, (dd,), jnp.float32)
        b1 = 0.1 * jax.random.normal(kb1, (dd,), jnp.float32)
        g2 = 1.0 + 0.1 * jax.random.normal(kg2, (dd,), jnp.float32)
        b2 = 0.1 * jax.random.normal(kb2, (dd,), jnp.float32)
        return w, b, g1, b1, g2, b2

    flags = dict(do_layernorm_pre=True, do_layernorm_post=True, do_relu=True)

    # Case 1: image_size=16 (lane-packed path), shape (2, 4, 16, 16).
    d1 = 16
    x1 = jax.random.normal(k_case1, (2, 4, 16, d1), jnp.float32)
    w1, b1_, g11, b11, g21, b21 = _make_params(k_par1, d1)
    out1 = jax.block_until_ready(lin_layer(x1, w1, b1_, g11, b11, g21, b21, **flags))
    ref1 = _reference(x1, w1, b1_, g11, b11, g21, b21, **flags)
    assert out1.shape == ref1.shape and out1.dtype == ref1.dtype
    err1 = float(jnp.max(jnp.abs(out1 - ref1)))
    assert err1 < 5e-5, ("packed path mismatch vs reference", err1)

    # Case 2: image_size=128 (standard lane-dense path), shape (2, 8, 128).
    d2 = 128
    x2_in = jax.random.normal(k_case2, (2, 8, d2), jnp.float32)
    w2, b2_, g12, b12, g22, b22 = _make_params(k_par2, d2)
    out2 = jax.block_until_ready(lin_layer(x2_in, w2, b2_, g12, b12, g22, b22, **flags))
    ref2 = _reference(x2_in, w2, b2_, g12, b12, g22, b22, **flags)
    assert out2.shape == ref2.shape and out2.dtype == ref2.dtype
    err2 = float(jnp.max(jnp.abs(out2 - ref2)))
    assert err2 < 5e-5, ("standard path mismatch vs reference", err2)

    print("KERNEL_OK")
</pallas_src>

<mosaic_0001>
module attributes {stable_mosaic.version = 11 : i64} {
  func.func @_lin_kernel_packed(%arg0: i32, %arg1: memref<16x128xf32, #tpu.memory_space<vmem>>, %arg2: memref<128x128xf32, #tpu.memory_space<vmem>>, %arg3: memref<8x128xf32, #tpu.memory_space<vmem>>, %arg4: memref<128x128xf32, #tpu.memory_space<vmem>>, %arg5: memref<16x128xf32, #tpu.memory_space<vmem>>) attributes {dimension_semantics = [#tpu.dimension_semantics<parallel>], iteration_bounds = array<i64: 1>, scalar_prefetch = 0 : i64, scratch_operands = 0 : i64, tpu.core_type = #tpu.core_type<tc>, window_params = [{transform_indices = @transform_0, window_bounds = array<i64: 16, 128>}, {pipeline_mode = #tpu.pipeline_mode<synchronous>, transform_indices = @transform_1, window_bounds = array<i64: 128, 128>}, {pipeline_mode = #tpu.pipeline_mode<synchronous>, transform_indices = @transform_2, window_bounds = array<i64: 8, 128>}, {pipeline_mode = #tpu.pipeline_mode<synchronous>, transform_indices = @transform_3, window_bounds = array<i64: 128, 128>}, {transform_indices = @transform_4, window_bounds = array<i64: 16, 128>}]} {
    %c0 = arith.constant 0 : index
    %c0_0 = arith.constant 0 : index
    %0 = vector.load %arg3[%c0, %c0_0] : memref<8x128xf32, #tpu.memory_space<vmem>>, vector<8x128xf32>
    %1 = vector.extract_strided_slice %0 {offsets = [0, 0], sizes = [1, 128], strides = [1, 1]} : vector<8x128xf32> to vector<1x128xf32>
    %2 = vector.extract_strided_slice %0 {offsets = [1, 0], sizes = [1, 128], strides = [1, 1]} : vector<8x128xf32> to vector<1x128xf32>
    %3 = vector.extract_strided_slice %0 {offsets = [2, 0], sizes = [1, 128], strides = [1, 1]} : vector<8x128xf32> to vector<1x128xf32>
    %4 = vector.extract_strided_slice %0 {offsets = [3, 0], sizes = [1, 128], strides = [1, 1]} : vector<8x128xf32> to vector<1x128xf32>
    %5 = vector.extract_strided_slice %0 {offsets = [4, 0], sizes = [1, 128], strides = [1, 1]} : vector<8x128xf32> to vector<1x128xf32>
    %c0_1 = arith.constant 0 : index
    %c0_2 = arith.constant 0 : index
    %6 = vector.load %arg4[%c0_1, %c0_2] : memref<128x128xf32, #tpu.memory_space<vmem>>, vector<128x128xf32>
    %c0_3 = arith.constant 0 : index
    %c0_4 = arith.constant 0 : index
    %7 = vector.load %arg1[%c0_3, %c0_4] : memref<16x128xf32, #tpu.memory_space<vmem>>, vector<16x128xf32>
    %8 = arith.truncf %7 : vector<16x128xf32> to vector<16x128xbf16>
    %9 = arith.extf %8 : vector<16x128xbf16> to vector<16x128xf32>
    %10 = arith.subf %7, %9 : vector<16x128xf32>
    %cst = arith.constant dense<0.000000e+00> : vector<16x128xf32>
    %11 = tpu.matmul %9, %6, %cst {dimension_numbers = #tpu.dot_dimension_numbers<[1], [0], [0], [1], [0, 0, 1, 1], [], []>} : vector<16x128xf32>, vector<128x128xf32>, vector<16x128xf32> -> vector<16x128xf32>
    %cst_5 = arith.constant dense<0.000000e+00> : vector<16x128xf32>
    %12 = tpu.matmul %10, %6, %cst_5 {dimension_numbers = #tpu.dot_dimension_numbers<[1], [0], [0], [1], [0, 0, 1, 1], [], []>} : vector<16x128xf32>, vector<128x128xf32>, vector<16x128xf32> -> vector<16x128xf32>
    %13 = arith.addf %11, %12 : vector<16x128xf32>
    %cst_6 = arith.constant 6.250000e-02 : f32
    %14 = vector.broadcast %cst_6 : f32 to vector<16x128xf32>
    %15 = arith.mulf %13, %14 : vector<16x128xf32>
    %16 = arith.subf %7, %15 : vector<16x128xf32>
    %17 = arith.mulf %16, %16 : vector<16x128xf32>
    %18 = arith.truncf %17 : vector<16x128xf32> to vector<16x128xbf16>
    %19 = arith.extf %18 : vector<16x128xbf16> to vector<16x128xf32>
    %20 = arith.subf %17, %19 : vector<16x128xf32>
    %cst_7 = arith.constant dense<0.000000e+00> : vector<16x128xf32>
    %21 = tpu.matmul %19, %6, %cst_7 {dimension_numbers = #tpu.dot_dimension_numbers<[1], [0], [0], [1], [0, 0, 1, 1], [], []>} : vector<16x128xf32>, vector<128x128xf32>, vector<16x128xf32> -> vector<16x128xf32>
    %cst_8 = arith.constant dense<0.000000e+00> : vector<16x128xf32>
    %22 = tpu.matmul %20, %6, %cst_8 {dimension_numbers = #tpu.dot_dimension_numbers<[1], [0], [0], [1], [0, 0, 1, 1], [], []>} : vector<16x128xf32>, vector<128x128xf32>, vector<16x128xf32> -> vector<16x128xf32>
    %23 = arith.addf %21, %22 : vector<16x128xf32>
    %cst_9 = arith.constant 6.250000e-02 : f32
    %24 = vector.broadcast %cst_9 : f32 to vector<16x128xf32>
    %25 = arith.mulf %23, %24 : vector<16x128xf32>
    %cst_10 = arith.constant 9.99999974E-6 : f32
    %26 = vector.broadcast %cst_10 : f32 to vector<16x128xf32>
    %27 = arith.addf %25, %26 : vector<16x128xf32>
    %28 = math.rsqrt %27 : vector<16x128xf32>
    %29 = arith.mulf %16, %28 : vector<16x128xf32>
    %30 = vector.broadcast %2 : vector<1x128xf32> to vector<16x128xf32>
    %31 = arith.mulf %29, %30 : vector<16x128xf32>
    %32 = vector.broadcast %3 : vector<1x128xf32> to vector<16x128xf32>
    %33 = arith.addf %31, %32 : vector<16x128xf32>
    %c0_11 = arith.constant 0 : index
    %c0_12 = arith.constant 0 : index
    %34 = vector.load %arg2[%c0_11, %c0_12] : memref<128x128xf32, #tpu.memory_space<vmem>>, vector<128x128xf32>
    %cst_13 = arith.constant dense<0.000000e+00> : vector<16x128xf32>
    %35 = tpu.matmul %33, %34, %cst_13 {dimension_numbers = #tpu.dot_dimension_numbers<[1], [0], [0], [1], [0, 0, 1, 1], [], []>} : vector<16x128xf32>, vector<128x128xf32>, vector<16x128xf32> -> vector<16x128xf32>
    %36 = vector.broadcast %1 : vector<1x128xf32> to vector<16x128xf32>
    %37 = arith.addf %35, %36 : vector<16x128xf32>
    %38 = arith.truncf %37 : vector<16x128xf32> to vector<16x128xbf16>
    %39 = arith.extf %38 : vector<16x128xbf16> to vector<16x128xf32>
    %40 = arith.subf %37, %39 : vector<16x128xf32>
    %cst_14 = arith.constant dense<0.000000e+00> : vector<16x128xf32>
    %41 = tpu.matmul %39, %6, %cst_14 {dimension_numbers = #tpu.dot_dimension_numbers<[1], [0], [0], [1], [0, 0, 1, 1], [], []>} : vector<16x128xf32>, vector<128x128xf32>, vector<16x128xf32> -> vector<16x128xf32>
    %cst_15 = arith.constant dense<0.000000e+00> : vector<16x128xf32>
    %42 = tpu.matmul %40, %6, %cst_15 {dimension_numbers = #tpu.dot_dimension_numbers<[1], [0], [0], [1], [0, 0, 1, 1], [], []>} : vector<16x128xf32>, vector<128x128xf32>, vector<16x128xf32> -> vector<16x128xf32>
    %43 = arith.addf %41, %42 : vector<16x128xf32>
    %cst_16 = arith.constant 6.250000e-02 : f32
    %44 = vector.broadcast %cst_16 : f32 to vector<16x128xf32>
    %45 = arith.mulf %43, %44 : vector<16x128xf32>
    %46 = arith.subf %37, %45 : vector<16x128xf32>
    %47 = arith.mulf %46, %46 : vector<16x128xf32>
    %48 = arith.truncf %47 : vector<16x128xf32> to vector<16x128xbf16>
    %49 = arith.extf %48 : vector<16x128xbf16> to vector<16x128xf32>
    %50 = arith.subf %47, %49 : vector<16x128xf32>
    %cst_17 = arith.constant dense<0.000000e+00> : vector<16x128xf32>
    %51 = tpu.matmul %49, %6, %cst_17 {dimension_numbers = #tpu.dot_dimension_numbers<[1], [0], [0], [1], [0, 0, 1, 1], [], []>} : vector<16x128xf32>, vector<128x128xf32>, vector<16x128xf32> -> vector<16x128xf32>
    %cst_18 = arith.constant dense<0.000000e+00> : vector<16x128xf32>
    %52 = tpu.matmul %50, %6, %cst_18 {dimension_numbers = #tpu.dot_dimension_numbers<[1], [0], [0], [1], [0, 0, 1, 1], [], []>} : vector<16x128xf32>, vector<128x128xf32>, vector<16x128xf32> -> vector<16x128xf32>
    %53 = arith.addf %51, %52 : vector<16x128xf32>
    %cst_19 = arith.constant 6.250000e-02 : f32
    %54 = vector.broadcast %cst_19 : f32 to vector<16x128xf32>
    %55 = arith.mulf %53, %54 : vector<16x128xf32>
    %cst_20 = arith.constant 9.99999974E-6 : f32
    %56 = vector.broadcast %cst_20 : f32 to vector<16x128xf32>
    %57 = arith.addf %55, %56 : vector<16x128xf32>
    %58 = math.rsqrt %57 : vector<16x128xf32>
    %59 = arith.mulf %46, %58 : vector<16x128xf32>
    %60 = vector.broadcast %4 : vector<1x128xf32> to vector<16x128xf32>
    %61 = arith.mulf %59, %60 : vector<16x128xf32>
    %62 = vector.broadcast %5 : vector<1x128xf32> to vector<16x128xf32>
    %63 = arith.addf %61, %62 : vector<16x128xf32>
    %cst_21 = arith.constant 0.000000e+00 : f32
    %64 = vector.broadcast %cst_21 : f32 to vector<16x128xf32>
    %65 = arith.maximumf %63, %64 : vector<16x128xf32>
    %c0_22 = arith.constant 0 : index
    %c0_23 = arith.constant 0 : index
    %66 = vector.load %arg5[%c0_22, %c0_23] : memref<16x128xf32, #tpu.memory_space<vmem>>, vector<16x128xf32>
    tpu.vector_store %arg5[%c0_22, %c0_23], %65 {strides = array<i32>} : memref<16x128xf32, #tpu.memory_space<vmem>>, vector<16x128xf32>,
    return
  }
  func.func @transform_0(%arg0: i32) -> (i32, i32) {
    %c0_i32 = arith.constant 0 : i32
    %c0_i32_0 = arith.constant 0 : i32
    return %arg0, %c0_i32 : i32, i32
  }
  func.func @transform_1(%arg0: i32) -> (i32, i32) {
    %c0_i32 = arith.constant 0 : i32
    %c0_i32_0 = arith.constant 0 : i32
    %c0_i32_1 = arith.constant 0 : i32
    return %c0_i32, %c0_i32_0 : i32, i32
  }
  func.func @transform_2(%arg0: i32) -> (i32, i32) {
    %c0_i32 = arith.constant 0 : i32
    %c0_i32_0 = arith.constant 0 : i32
    %c0_i32_1 = arith.constant 0 : i32
    return %c0_i32, %c0_i32_0 : i32, i32
  }
  func.func @transform_3(%arg0: i32) -> (i32, i32) {
    %c0_i32 = arith.constant 0 : i32
    %c0_i32_0 = arith.constant 0 : i32
    %c0_i32_1 = arith.constant 0 : i32
    return %c0_i32, %c0_i32_0 : i32, i32
  }
  func.func @transform_4(%arg0: i32) -> (i32, i32) {
    %c0_i32 = arith.constant 0 : i32
    %c0_i32_0 = arith.constant 0 : i32
    return %arg0, %c0_i32 : i32, i32
  }
}

module attributes {stable_mosaic.version = 11 : i64} {
  func.func @_lin_kernel_packed(%arg0: i32, %arg1: memref<16x128xf32, #tpu.memory_space<vmem>>, %arg2: memref<128x128xf32, #tpu.memory_space<vmem>>, %arg3: memref<8x128xf32, #tpu.memory_space<vmem>>, %arg4: memref<128x128xf32, #tpu.memory_space<vmem>>, %arg5: memref<16x128xf32, #tpu.memory_space<vmem>>) attributes {dimension_semantics = [#tpu.dimension_semantics<parallel>], iteration_bounds = array<i64: 1>, scalar_prefetch = 0 : i64, scratch_operands = 0 : i64, tpu.core_type = #tpu.core_type<tc>, window_params = [{transform_indices = @transform_0, window_bounds = array<i64: 16, 128>}, {pipeline_mode = #tpu.pipeline_mode<synchronous>, transform_indices = @transform_1, window_bounds = array<i64: 128, 128>}, {pipeline_mode = #tpu.pipeline_mode<synchronous>, transform_indices = @transform_2, window_bounds = array<i64: 8, 128>}, {pipeline_mode = #tpu.pipeline_mode<synchronous>, transform_indices = @transform_3, window_bounds = array<i64: 128, 128>}, {transform_indices = @transform_4, window_bounds = array<i64: 16, 128>}]} {
    %c0 = arith.constant 0 : index
    %c0_0 = arith.constant 0 : index
    %0 = vector.load %arg3[%c0, %c0_0] : memref<8x128xf32, #tpu.memory_space<vmem>>, vector<8x128xf32>
    %1 = vector.extract_strided_slice %0 {offsets = [0, 0], sizes = [1, 128], strides = [1, 1]} : vector<8x128xf32> to vector<1x128xf32>
    %2 = vector.extract_strided_slice %0 {offsets = [1, 0], sizes = [1, 128], strides = [1, 1]} : vector<8x128xf32> to vector<1x128xf32>
    %3 = vector.extract_strided_slice %0 {offsets = [2, 0], sizes = [1, 128], strides = [1, 1]} : vector<8x128xf32> to vector<1x128xf32>
    %4 = vector.extract_strided_slice %0 {offsets = [3, 0], sizes = [1, 128], strides = [1, 1]} : vector<8x128xf32> to vector<1x128xf32>
    %5 = vector.extract_strided_slice %0 {offsets = [4, 0], sizes = [1, 128], strides = [1, 1]} : vector<8x128xf32> to vector<1x128xf32>
    %c0_1 = arith.constant 0 : index
    %c0_2 = arith.constant 0 : index
    %6 = vector.load %arg4[%c0_1, %c0_2] : memref<128x128xf32, #tpu.memory_space<vmem>>, vector<128x128xf32>
    %c0_3 = arith.constant 0 : index
    %c0_4 = arith.constant 0 : index
    %7 = vector.load %arg1[%c0_3, %c0_4] : memref<16x128xf32, #tpu.memory_space<vmem>>, vector<16x128xf32>
    %8 = arith.truncf %7 : vector<16x128xf32> to vector<16x128xbf16>
    %9 = arith.extf %8 : vector<16x128xbf16> to vector<16x128xf32>
    %10 = arith.subf %7, %9 : vector<16x128xf32>
    %cst = arith.constant dense<0.000000e+00> : vector<16x128xf32>
    %11 = tpu.matmul %9, %6, %cst {dimension_numbers = #tpu.dot_dimension_numbers<[1], [0], [0], [1], [0, 0, 1, 1], [], []>} : vector<16x128xf32>, vector<128x128xf32>, vector<16x128xf32> -> vector<16x128xf32>
    %cst_5 = arith.constant dense<0.000000e+00> : vector<16x128xf32>
    %12 = tpu.matmul %10, %6, %cst_5 {dimension_numbers = #tpu.dot_dimension_numbers<[1], [0], [0], [1], [0, 0, 1, 1], [], []>} : vector<16x128xf32>, vector<128x128xf32>, vector<16x128xf32> -> vector<16x128xf32>
    %13 = arith.addf %11, %12 : vector<16x128xf32>
    %cst_6 = arith.constant 6.250000e-02 : f32
    %14 = vector.broadcast %cst_6 : f32 to vector<16x128xf32>
    %15 = arith.mulf %13, %14 : vector<16x128xf32>
    %16 = arith.subf %7, %15 : vector<16x128xf32>
    %17 = arith.mulf %16, %16 : vector<16x128xf32>
    %18 = arith.truncf %17 : vector<16x128xf32> to vector<16x128xbf16>
    %19 = arith.extf %18 : vector<16x128xbf16> to vector<16x128xf32>
    %20 = arith.subf %17, %19 : vector<16x128xf32>
    %cst_7 = arith.constant dense<0.000000e+00> : vector<16x128xf32>
    %21 = tpu.matmul %19, %6, %cst_7 {dimension_numbers = #tpu.dot_dimension_numbers<[1], [0], [0], [1], [0, 0, 1, 1], [], []>} : vector<16x128xf32>, vector<128x128xf32>, vector<16x128xf32> -> vector<16x128xf32>
    %cst_8 = arith.constant dense<0.000000e+00> : vector<16x128xf32>
    %22 = tpu.matmul %20, %6, %cst_8 {dimension_numbers = #tpu.dot_dimension_numbers<[1], [0], [0], [1], [0, 0, 1, 1], [], []>} : vector<16x128xf32>, vector<128x128xf32>, vector<16x128xf32> -> vector<16x128xf32>
    %23 = arith.addf %21, %22 : vector<16x128xf32>
    %cst_9 = arith.constant 6.250000e-02 : f32
    %24 = vector.broadcast %cst_9 : f32 to vector<16x128xf32>
    %25 = arith.mulf %23, %24 : vector<16x128xf32>
    %cst_10 = arith.constant 9.99999974E-6 : f32
    %26 = vector.broadcast %cst_10 : f32 to vector<16x128xf32>
    %27 = arith.addf %25, %26 : vector<16x128xf32>
    %28 = math.rsqrt %27 : vector<16x128xf32>
    %29 = arith.mulf %16, %28 : vector<16x128xf32>
    %30 = vector.broadcast %2 : vector<1x128xf32> to vector<16x128xf32>
    %31 = arith.mulf %29, %30 : vector<16x128xf32>
    %32 = vector.broadcast %3 : vector<1x128xf32> to vector<16x128xf32>
    %33 = arith.addf %31, %32 : vector<16x128xf32>
    %c0_11 = arith.constant 0 : index
    %c0_12 = arith.constant 0 : index
    %34 = vector.load %arg2[%c0_11, %c0_12] : memref<128x128xf32, #tpu.memory_space<vmem>>, vector<128x128xf32>
    %cst_13 = arith.constant dense<0.000000e+00> : vector<16x128xf32>
    %35 = tpu.matmul %33, %34, %cst_13 {dimension_numbers = #tpu.dot_dimension_numbers<[1], [0], [0], [1], [0, 0, 1, 1], [], []>} : vector<16x128xf32>, vector<128x128xf32>, vector<16x128xf32> -> vector<16x128xf32>
    %36 = vector.broadcast %1 : vector<1x128xf32> to vector<16x128xf32>
    %37 = arith.addf %35, %36 : vector<16x128xf32>
    %38 = arith.truncf %37 : vector<16x128xf32> to vector<16x128xbf16>
    %39 = arith.extf %38 : vector<16x128xbf16> to vector<16x128xf32>
    %40 = arith.subf %37, %39 : vector<16x128xf32>
    %cst_14 = arith.constant dense<0.000000e+00> : vector<16x128xf32>
    %41 = tpu.matmul %39, %6, %cst_14 {dimension_numbers = #tpu.dot_dimension_numbers<[1], [0], [0], [1], [0, 0, 1, 1], [], []>} : vector<16x128xf32>, vector<128x128xf32>, vector<16x128xf32> -> vector<16x128xf32>
    %cst_15 = arith.constant dense<0.000000e+00> : vector<16x128xf32>
    %42 = tpu.matmul %40, %6, %cst_15 {dimension_numbers = #tpu.dot_dimension_numbers<[1], [0], [0], [1], [0, 0, 1, 1], [], []>} : vector<16x128xf32>, vector<128x128xf32>, vector<16x128xf32> -> vector<16x128xf32>
    %43 = arith.addf %41, %42 : vector<16x128xf32>
    %cst_16 = arith.constant 6.250000e-02 : f32
    %44 = vector.broadcast %cst_16 : f32 to vector<16x128xf32>
    %45 = arith.mulf %43, %44 : vector<16x128xf32>
    %46 = arith.subf %37, %45 : vector<16x128xf32>
    %47 = arith.mulf %46, %46 : vector<16x128xf32>
    %48 = arith.truncf %47 : vector<16x128xf32> to vector<16x128xbf16>
    %49 = arith.extf %48 : vector<16x128xbf16> to vector<16x128xf32>
    %50 = arith.subf %47, %49 : vector<16x128xf32>
    %cst_17 = arith.constant dense<0.000000e+00> : vector<16x128xf32>
    %51 = tpu.matmul %49, %6, %cst_17 {dimension_numbers = #tpu.dot_dimension_numbers<[1], [0], [0], [1], [0, 0, 1, 1], [], []>} : vector<16x128xf32>, vector<128x128xf32>, vector<16x128xf32> -> vector<16x128xf32>
    %cst_18 = arith.constant dense<0.000000e+00> : vector<16x128xf32>
    %52 = tpu.matmul %50, %6, %cst_18 {dimension_numbers = #tpu.dot_dimension_numbers<[1], [0], [0], [1], [0, 0, 1, 1], [], []>} : vector<16x128xf32>, vector<128x128xf32>, vector<16x128xf32> -> vector<16x128xf32>
    %53 = arith.addf %51, %52 : vector<16x128xf32>
    %cst_19 = arith.constant 6.250000e-02 : f32
    %54 = vector.broadcast %cst_19 : f32 to vector<16x128xf32>
    %55 = arith.mulf %53, %54 : vector<16x128xf32>
    %cst_20 = arith.constant 9.99999974E-6 : f32
    %56 = vector.broadcast %cst_20 : f32 to vector<16x128xf32>
    %57 = arith.addf %55, %56 : vector<16x128xf32>
    %58 = math.rsqrt %57 : vector<16x128xf32>
    %59 = arith.mulf %46, %58 : vector<16x128xf32>
    %60 = vector.broadcast %4 : vector<1x128xf32> to vector<16x128xf32>
    %61 = arith.mulf %59, %60 : vector<16x128xf32>
    %62 = vector.broadcast %5 : vector<1x128xf32> to vector<16x128xf32>
    %63 = arith.addf %61, %62 : vector<16x128xf32>
    %cst_21 = arith.constant 0.000000e+00 : f32
    %64 = vector.broadcast %cst_21 : f32 to vector<16x128xf32>
    %65 = arith.maximumf %63, %64 : vector<16x128xf32>
    %c0_22 = arith.constant 0 : index
    %c0_23 = arith.constant 0 : index
    %66 = vector.load %arg5[%c0_22, %c0_23] : memref<16x128xf32, #tpu.memory_space<vmem>>, vector<16x128xf32>
    tpu.vector_store %arg5[%c0_22, %c0_23], %65 {strides = array<i32>} : memref<16x128xf32, #tpu.memory_space<vmem>>, vector<16x128xf32>,
    return
  }
  func.func @transform_0(%arg0: i32) -> (i32, i32) {
    %c0_i32 = arith.constant 0 : i32
    %c0_i32_0 = arith.constant 0 : i32
    return %arg0, %c0_i32 : i32, i32
  }
  func.func @transform_1(%arg0: i32) -> (i32, i32) {
    %c0_i32 = arith.constant 0 : i32
    %c0_i32_0 = arith.constant 0 : i32
    %c0_i32_1 = arith.constant 0 : i32
    return %c0_i32, %c0_i32_0 : i32, i32
  }
  func.func @transform_2(%arg0: i32) -> (i32, i32) {
    %c0_i32 = arith.constant 0 : i32
    %c0_i32_0 = arith.constant 0 : i32
    %c0_i32_1 = arith.constant 0 : i32
    return %c0_i32, %c0_i32_0 : i32, i32
  }
  func.func @transform_3(%arg0: i32) -> (i32, i32) {
    %c0_i32 = arith.constant 0 : i32
    %c0_i32_0 = arith.constant 0 : i32
    %c0_i32_1 = arith.constant 0 : i32
    return %c0_i32, %c0_i32_0 : i32, i32
  }
  func.func @transform_4(%arg0: i32) -> (i32, i32) {
    %c0_i32 = arith.constant 0 : i32
    %c0_i32_0 = arith.constant 0 : i32
    return %arg0, %c0_i32 : i32, i32
  }
}

</mosaic_0001>

<llo_original>
// kernel: tpu_custom_call.1
$region0: #{tpu_custom_call.1}
  #allocation0 [shape = 'u32[]', space=smem, size = 0x4, offset = 0x4, fixed_abs, tag = 'smem constant byte address 0x4 - core index']
  #allocation1 [shape = 'u32[72,128]{1,0:T(1,128)}', space=vmem, size = 0x9000, scoped, tag = 'internal scratch']
  %s0 = inlined_call_operand.hbm [shape: f32[16,128], index: 0, kind: input, shape index: {}]
  %s1 = inlined_call_operand.hbm [shape: f32[128,128], index: 1, kind: input, shape index: {}]
  %s2 = inlined_call_operand.hbm [shape: f32[8,128], index: 2, kind: input, shape index: {}]
  %s3 = inlined_call_operand.hbm [shape: f32[128,128], index: 3, kind: input, shape index: {}]
  %s4 = inlined_call_operand.hbm [shape: f32[16,128], index: 4, kind: output, shape index: {}]
  %s5 = sld [smem:[#allocation0]]
  $region42: #{tpu_custom_call.1} parent=0
    _
  %s7 = ssub.s32 1, %s5
  %s8 = scalar_select 0, %s7, %s5
  $region1: #{tpu_custom_call.1} parent=0
    #allocation2 [shape = 'u8[8192]{0}', space=vmem, size = 0x2000, scoped, tag = 'input window, operand 0, single buffered']
    #allocation3 [shape = 's32[1]{0}', space=sflag, size = 0x4, scoped, tag = 'scoped memory for tpu_custom_call.1']
    #allocation4 [shape = 's32[1]{0}', space=sflag, size = 0x4, scoped, tag = 'scoped memory for tpu_custom_call.1']
    #allocation5 [shape = 'u8[65536]{0}', space=vmem, size = 0x10000, scoped, tag = 'input window, operand 1, single buffered']
    #allocation6 [shape = 's32[1]{0}', space=sflag, size = 0x4, scoped, tag = 'scoped memory for tpu_custom_call.1']
    #allocation7 [shape = 'u8[4096]{0}', space=vmem, size = 0x1000, scoped, tag = 'input window, operand 2, single buffered']
    #allocation8 [shape = 'u8[65536]{0}', space=vmem, size = 0x10000, scoped, tag = 'input window, operand 3, single buffered']
    #allocation9 [shape = 's32[1]{0}', space=sflag, size = 0x4, scoped, tag = 'scoped memory for tpu_custom_call.1']
    #allocation10 [shape = 'u8[8192]{0}', space=vmem, size = 0x2000, scoped, tag = 'output window, operand 0, single buffered']
    %9 = vsyncpa [#allocation3], 0
    %10 = vsyncpa [#allocation6], 0
    %11 = vsyncpa [#allocation9], 0
    %12 = vsyncpa [#allocation4], 0
    // Predicated region
    $region2: #{tpu_custom_call.1} parent=1 // pred_check
      _
    $region3: #{tpu_custom_call.1} parent=1 // pred_check_branch
      %14 = sbr.rel (0) target = $region5
    $region4: #{tpu_custom_call.1} parent=1 // pred_region
      %16 = vsyncadd [#allocation3], 0
      %s17 = sshll.u32 %s0, 4
      %s18 = int_to_ptr.hbm [resolvable:$true] %s17
      %s19 = sshll.u32 [#allocation2], 4
      %s20 = int_to_ptr.vmem [resolvable:$true] %s19
      %25 = dma.hbm_to_vmem [thread:$0]  %s18, 256, %s20, [#allocation3], 128, 128, 8
    $region5: #{tpu_custom_call.1} parent=1 // pred_fallthru
      _
    // Predicated region
    $region6: #{tpu_custom_call.1} parent=1 // pred_check
      _
    $region7: #{tpu_custom_call.1} parent=1 // pred_check_branch
      %27 = sbr.rel (0) target = $region9
    $region8: #{tpu_custom_call.1} parent=1 // pred_region
      %29 = vsyncadd [#allocation6], 0
      %s30 = sshll.u32 %s1, 4
      %s31 = int_to_ptr.hbm [resolvable:$true] %s30
      %s32 = sshll.u32 [#allocation5], 4
      %s33 = int_to_ptr.vmem [resolvable:$true] %s32
      %38 = dma.hbm_to_vmem [thread:$0]  %s31, 2048, %s33, [#allocation6], 128, 128, 8
    $region9: #{tpu_custom_call.1} parent=1 // pred_fallthru
      _
    // Predicated region
    $region10: #{tpu_custom_call.1} parent=1 // pred_check
      _
    $region11: #{tpu_custom_call.1} parent=1 // pred_check_branch
      %40 = sbr.rel (0) target = $region13
    $region12: #{tpu_custom_call.1} parent=1 // pred_region
      %42 = vsyncadd [#allocation6], 0
      %s44 = sshll.u32 %s2, 4
      %s45 = int_to_ptr.hbm [resolvable:$true] %s44
      %s46 = sshll.u32 [#allocation7], 4
      %s47 = int_to_ptr.vmem [resolvable:$true] %s46
      %49 = dma.hbm_to_vmem [thread:$0]  %s45, 128, %s47, [#allocation6]
    $region13: #{tpu_custom_call.1} parent=1 // pred_fallthru
      _
    // Predicated region
    $region14: #{tpu_custom_call.1} parent=1 // pred_check
      _
    $region15: #{tpu_custom_call.1} parent=1 // pred_check_branch
      %51 = sbr.rel (0) target = $region17
    $region16: #{tpu_custom_call.1} parent=1 // pred_region
      %53 = vsyncadd [#allocation9], 0
      %s54 = sshll.u32 %s3, 4
      %s55 = int_to_ptr.hbm [resolvable:$true] %s54
      %s56 = sshll.u32 [#allocation8], 4
      %s57 = int_to_ptr.vmem [resolvable:$true] %s56
      %62 = dma.hbm_to_vmem [thread:$0]  %s55, 2048, %s57, [#allocation9], 128, 128, 8
    $region17: #{tpu_custom_call.1} parent=1 // pred_fallthru
      _
    // Predicated region
    $region18: #{tpu_custom_call.1} parent=1 // pred_check
      _
    $region19: #{tpu_custom_call.1} parent=1 // pred_check_branch
      %64 = sbr.rel (0) target = $region21
    $region20: #{tpu_custom_call.1} parent=1 // pred_region
      %66 = dma.done [#allocation3], 256
    $region21: #{tpu_custom_call.1} parent=1 // pred_fallthru
      _
    // Predicated region
    $region22: #{tpu_custom_call.1} parent=1 // pred_check
      _
    $region23: #{tpu_custom_call.1} parent=1 // pred_check_branch
      %68 = sbr.rel (0) target = $region25
    $region24: #{tpu_custom_call.1} parent=1 // pred_region
      %70 = dma.done [#allocation6], 2048
    $region25: #{tpu_custom_call.1} parent=1 // pred_fallthru
      _
    // Predicated region
    $region26: #{tpu_custom_call.1} parent=1 // pred_check
      _
    $region27: #{tpu_custom_call.1} parent=1 // pred_check_branch
      %72 = sbr.rel (0) target = $region29
    $region28: #{tpu_custom_call.1} parent=1 // pred_region
      %74 = dma.done [#allocation6], 128
    $region29: #{tpu_custom_call.1} parent=1 // pred_fallthru
      _
    // Predicated region
    $region30: #{tpu_custom_call.1} parent=1 // pred_check
      _
    $region31: #{tpu_custom_call.1} parent=1 // pred_check_branch
      %76 = sbr.rel (0) target = $region33
    $region32: #{tpu_custom_call.1} parent=1 // pred_region
      %78 = dma.done [#allocation9], 2048
    $region33: #{tpu_custom_call.1} parent=1 // pred_fallthru
      _
    %v79 = vld [vmem:[#allocation7] sm:$0xff]
    %v80 = vld [vmem:[#allocation8] sm:$0xff]
    %v81 = vld [vmem:[#allocation8 + $0x8] sm:$0xff]
    %v82 = vld [vmem:[#allocation8 + $0x10] sm:$0xff]
    %v83 = vld [vmem:[#allocation8 + $0x18] sm:$0xff]
    %v84 = vld [vmem:[#allocation8 + $0x20] sm:$0xff]
    %v85 = vld [vmem:[#allocation8 + $0x28] sm:$0xff]
    %v86 = vld [vmem:[#allocation8 + $0x30] sm:$0xff]
    %v87 = vld [vmem:[#allocation8 + $0x38] sm:$0xff]
    %v88 = vld [vmem:[#allocation8 + $0x40] sm:$0xff]
    %v89 = vld [vmem:[#allocation8 + $0x48] sm:$0xff]
    %v90 = vld [vmem:[#allocation8 + $0x50] sm:$0xff]
    %v91 = vld [vmem:[#allocation8 + $0x58] sm:$0xff]
    %v92 = vld [vmem:[#allocation8 + $0x60] sm:$0xff]
    %v93 = vld [vmem:[#allocation8 + $0x68] sm:$0xff]
    %v94 = vld [vmem:[#allocation8 + $0x70] sm:$0xff]
    %v95 = vld [vmem:[#allocation8 + $0x78] sm:$0xff]
    %v96 = vld [vmem:[#allocation2] sm:$0xff]
    %v97 = vld [vmem:[#allocation2 + $0x8] sm:$0xff]
    %v98 = vpack.c.bf16 %v96, %v96
    %v99 = vpack.c.bf16 %v97, %v97
    %v100 = vunpack.c.l.bf16 %v98
    %v101 = vunpack.c.l.bf16 %v99
    %v102 = vsub.f32 %v96, %v100
    %v103 = vsub.f32 %v97, %v101
    %104 = vmatpush.msra.mxu0 %v95
    %105 = vmatpush.msra.mxu0 %v94
    %106 = vmatpush.msra.mxu0 %v93
    %107 = vmatpush.msra.mxu0 %v92
    %108 = vmatpush.msra.mxu0 %v91
    %109 = vmatpush.msra.mxu0 %v90
    %110 = vmatpush.msra.mxu0 %v89
    %111 = vmatpush.msra.mxu0 %v88
    %112 = vmatpush.msra.mxu0 %v87
    %113 = vmatpush.msra.mxu0 %v86
    %114 = vmatpush.msra.mxu0 %v85
    %115 = vmatpush.msra.mxu0 %v84
    %116 = vmatpush.msra.mxu0 %v83
    %117 = vmatpush.msra.mxu0 %v82
    %118 = vmatpush.msra.mxu0 %v81
    %119 = vmatpush.msra.mxu0 %v80
    %120 = vmatmul.f32.gmra.mxu0 %v102
    %v121 = vpop.f32.mrf.mxu0
    %v122 = vadd.f32 0.0, %v121
    %123 = vmatmul.f32.gmra.mxu0 %v103
    %v124 = vpop.f32.mrf.mxu0
    %v125 = vadd.f32 0.0, %v124
    %126 = vdwg.mxu0
    %127 = vmatpush.msra.mxu0 %v95
    %128 = vmatpush.msra.mxu0 %v94
    %129 = vmatpush.msra.mxu0 %v93
    %130 = vmatpush.msra.mxu0 %v92
    %131 = vmatpush.msra.mxu0 %v91
    %132 = vmatpush.msra.mxu0 %v90
    %133 = vmatpush.msra.mxu0 %v89
    %134 = vmatpush.msra.mxu0 %v88
    %135 = vmatpush.msra.mxu0 %v87
    %136 = vmatpush.msra.mxu0 %v86
    %137 = vmatpush.msra.mxu0 %v85
    %138 = vmatpush.msra.mxu0 %v84
    %139 = vmatpush.msra.mxu0 %v83
    %140 = vmatpush.msra.mxu0 %v82
    %141 = vmatpush.msra.mxu0 %v81
    %142 = vmatpush.msra.mxu0 %v80
    %143 = vmatmul.f32.gmra.mxu0 %v100
    %v144 = vpop.f32.mrf.mxu0
    %v145 = vadd.f32 %v122, %v144
    %146 = vmatmul.f32.gmra.mxu0 %v101
    %v147 = vpop.f32.mrf.mxu0
    %v148 = vadd.f32 %v125, %v147
    %149 = vdwg.mxu0
    %v150 = vmul.f32 %v145, 0.0625
    %v151 = vmul.f32 %v148, 0.0625
    %v152 = vsub.f32 %v96, %v150
    %v153 = vsub.f32 %v97, %v151
    %v154 = vmul.f32 %v152, %v152
    %v155 = vmul.f32 %v153, %v153
    %v156 = vpack.c.bf16 %v154, %v154
    %v157 = vpack.c.bf16 %v155, %v155
    %v158 = vunpack.c.l.bf16 %v156
    %v159 = vunpack.c.l.bf16 %v157
    %v160 = vsub.f32 %v154, %v158
    %v161 = vsub.f32 %v155, %v159
    %162 = vmatpush.msra.mxu0 %v95
    %163 = vmatpush.msra.mxu0 %v94
    %164 = vmatpush.msra.mxu0 %v93
    %165 = vmatpush.msra.mxu0 %v92
    %166 = vmatpush.msra.mxu0 %v91
    %167 = vmatpush.msra.mxu0 %v90
    %168 = vmatpush.msra.mxu0 %v89
    %169 = vmatpush.msra.mxu0 %v88
    %170 = vmatpush.msra.mxu0 %v87
    %171 = vmatpush.msra.mxu0 %v86
    %172 = vmatpush.msra.mxu0 %v85
    %173 = vmatpush.msra.mxu0 %v84
    %174 = vmatpush.msra.mxu0 %v83
    %175 = vmatpush.msra.mxu0 %v82
    %176 = vmatpush.msra.mxu0 %v81
    %177 = vmatpush.msra.mxu0 %v80
    %178 = vmatmul.f32.gmra.mxu0 %v160
    %v179 = vpop.f32.mrf.mxu0
    %v180 = vadd.f32 0.0, %v179
    %181 = vmatmul.f32.gmra.mxu0 %v161
    %v182 = vpop.f32.mrf.mxu0
    %v183 = vadd.f32 0.0, %v182
    %184 = vdwg.mxu0
    %185 = vmatpush.msra.mxu0 %v95
    %186 = vmatpush.msra.mxu0 %v94
    %187 = vmatpush.msra.mxu0 %v93
    %188 = vmatpush.msra.mxu0 %v92
    %189 = vmatpush.msra.mxu0 %v91
    %190 = vmatpush.msra.mxu0 %v90
    %191 = vmatpush.msra.mxu0 %v89
    %192 = vmatpush.msra.mxu0 %v88
    %193 = vmatpush.msra.mxu0 %v87
    %194 = vmatpush.msra.mxu0 %v86
    %195 = vmatpush.msra.mxu0 %v85
    %196 = vmatpush.msra.mxu0 %v84
    %197 = vmatpush.msra.mxu0 %v83
    %198 = vmatpush.msra.mxu0 %v82
    %199 = vmatpush.msra.mxu0 %v81
    %200 = vmatpush.msra.mxu0 %v80
    %201 = vmatmul.f32.gmra.mxu0 %v158
    %v202 = vpop.f32.mrf.mxu0
    %v203 = vadd.f32 %v180, %v202
    %204 = vmatmul.f32.gmra.mxu0 %v159
    %v205 = vpop.f32.mrf.mxu0
    %v206 = vadd.f32 %v183, %v205
    %207 = vdwg.mxu0
    %v208 = vmul.f32 %v203, 0.0625
    %v209 = vmul.f32 %v206, 0.0625
    %v210 = vadd.f32 %v208, 1e-05
    %v211 = vadd.f32 %v209, 1e-05
    %v212 = vrsqrt.pop %v210
    %v213 = vmul.f32 %v212, %v210
    %v214 = vmul.f32 %v213, %v212
    %v215 = vmul.f32 0.5, %v214
    %v216 = vsub.f32 1.5, %v215
    %v217 = vmul.f32 %v212, %v216
    %vm218 = vweird.f32 %v210
    %vm219 = vweird.f32 %v212
    %vm220 = vmor %vm218, %vm219
    %v221 = vsel %vm220, %v212, %v217
    %v222 = vrsqrt.pop %v211
    %v223 = vmul.f32 %v222, %v211
    %v224 = vmul.f32 %v223, %v222
    %v225 = vmul.f32 0.5, %v224
    %v226 = vsub.f32 1.5, %v225
    %v227 = vmul.f32 %v222, %v226
    %vm228 = vweird.f32 %v211
    %vm229 = vweird.f32 %v222
    %vm230 = vmor %vm228, %vm229
    %v231 = vsel %vm230, %v222, %v227
    %v232 = vmul.f32 %v152, %v221
    %v233 = vmul.f32 %v153, %v231
    %v234 = vperm.slane %v79, 1
    %v235 = vmul.f32 %v232, %v234
    %v236 = vmul.f32 %v233, %v234
    %v237 = vperm.slane %v79, 2
    %v238 = vadd.f32 %v235, %v237
    %v239 = vadd.f32 %v236, %v237
    %v240 = vld [vmem:[#allocation5] sm:$0xff]
    %v241 = vld [vmem:[#allocation5 + $0x8] sm:$0xff]
    %v242 = vld [vmem:[#allocation5 + $0x10] sm:$0xff]
    %v243 = vld [vmem:[#allocation5 + $0x18] sm:$0xff]
    %v244 = vld [vmem:[#allocation5 + $0x20] sm:$0xff]
    %v245 = vld [vmem:[#allocation5 + $0x28] sm:$0xff]
    %v246 = vld [vmem:[#allocation5 + $0x30] sm:$0xff]
    %v247 = vld [vmem:[#allocation5 + $0x38] sm:$0xff]
    %v248 = vld [vmem:[#allocation5 + $0x40] sm:$0xff]
    %v249 = vld [vmem:[#allocation5 + $0x48] sm:$0xff]
    %v250 = vld [vmem:[#allocation5 + $0x50] sm:$0xff]
    %v251 = vld [vmem:[#allocation5 + $0x58] sm:$0xff]
    %v252 = vld [vmem:[#allocation5 + $0x60] sm:$0xff]
    %v253 = vld [vmem:[#allocation5 + $0x68] sm:$0xff]
    %v254 = vld [vmem:[#allocation5 + $0x70] sm:$0xff]
    %v255 = vld [vmem:[#allocation5 + $0x78] sm:$0xff]
    %v256 = vperm.slane %v79, 0
    %257 = vmatpush.msra.mxu0 %v255
    %258 = vmatpush.msra.mxu0 %v254
    %259 = vmatpush.msra.mxu0 %v253
    %260 = vmatpush.msra.mxu0 %v252
    %261 = vmatpush.msra.mxu0 %v251
    %262 = vmatpush.msra.mxu0 %v250
    %263 = vmatpush.msra.mxu0 %v249
    %264 = vmatpush.msra.mxu0 %v248
    %265 = vmatpush.msra.mxu0 %v247
    %266 = vmatpush.msra.mxu0 %v246
    %267 = vmatpush.msra.mxu0 %v245
    %268 = vmatpush.msra.mxu0 %v244
    %269 = vmatpush.msra.mxu0 %v243
    %270 = vmatpush.msra.mxu0 %v242
    %271 = vmatpush.msra.mxu0 %v241
    %272 = vmatpush.msra.mxu0 %v240
    %273 = vmatmul.f32.gmra.mxu0 %v238
    %v274 = vpop.f32.mrf.mxu0
    %v275 = vadd.f32 %v256, %v274
    %276 = vmatmul.f32.gmra.mxu0 %v239
    %v277 = vpop.f32.mrf.mxu0
    %v278 = vadd.f32 %v256, %v277
    %279 = vdwg.mxu0
    %v280 = vpack.c.bf16 %v275, %v275
    %v281 = vpack.c.bf16 %v278, %v278
    %v282 = vunpack.c.l.bf16 %v280
    %v283 = vunpack.c.l.bf16 %v281
    %v284 = vsub.f32 %v275, %v282
    %v285 = vsub.f32 %v278, %v283
    %286 = vmatpush.msra.mxu0 %v95
    %287 = vmatpush.msra.mxu0 %v94
    %288 = vmatpush.msra.mxu0 %v93
    %289 = vmatpush.msra.mxu0 %v92
    %290 = vmatpush.msra.mxu0 %v91
    %291 = vmatpush.msra.mxu0 %v90
    %292 = vmatpush.msra.mxu0 %v89
    %293 = vmatpush.msra.mxu0 %v88
    %294 = vmatpush.msra.mxu0 %v87
    %295 = vmatpush.msra.mxu0 %v86
    %296 = vmatpush.msra.mxu0 %v85
    %297 = vmatpush.msra.mxu0 %v84
    %298 = vmatpush.msra.mxu0 %v83
    %299 = vmatpush.msra.mxu0 %v82
    %300 = vmatpush.msra.mxu0 %v81
    %301 = vmatpush.msra.mxu0 %v80
    %302 = vmatmul.f32.gmra.mxu0 %v284
    %v303 = vpop.f32.mrf.mxu0
    %v304 = vadd.f32 0.0, %v303
    %305 = vmatmul.f32.gmra.mxu0 %v285
    %v306 = vpop.f32.mrf.mxu0
    %v307 = vadd.f32 0.0, %v306
    %308 = vdwg.mxu0
    %309 = vmatpush.msra.mxu0 %v95
    %310 = vmatpush.msra.mxu0 %v94
    %311 = vmatpush.msra.mxu0 %v93
    %312 = vmatpush.msra.mxu0 %v92
    %313 = vmatpush.msra.mxu0 %v91
    %314 = vmatpush.msra.mxu0 %v90
    %315 = vmatpush.msra.mxu0 %v89
    %316 = vmatpush.msra.mxu0 %v88
    %317 = vmatpush.msra.mxu0 %v87
    %318 = vmatpush.msra.mxu0 %v86
    %319 = vmatpush.msra.mxu0 %v85
    %320 = vmatpush.msra.mxu0 %v84
    %321 = vmatpush.msra.mxu0 %v83
    %322 = vmatpush.msra.mxu0 %v82
    %323 = vmatpush.msra.mxu0 %v81
    %324 = vmatpush.msra.mxu0 %v80
    %325 = vmatmul.f32.gmra.mxu0 %v282
    %v326 = vpop.f32.mrf.mxu0
    %v327 = vadd.f32 %v304, %v326
    %328 = vmatmul.f32.gmra.mxu0 %v283
    %v329 = vpop.f32.mrf.mxu0
    %v330 = vadd.f32 %v307, %v329
    %331 = vdwg.mxu0
    %v332 = vmul.f32 %v327, 0.0625
    %v333 = vmul.f32 %v330, 0.0625
    %v334 = vsub.f32 %v275, %v332
    %v335 = vsub.f32 %v278, %v333
    %v336 = vmul.f32 %v334, %v334
    %v337 = vmul.f32 %v335, %v335
    %v338 = vpack.c.bf16 %v336, %v336
    %v339 = vpack.c.bf16 %v337, %v337
    %v340 = vunpack.c.l.bf16 %v338
    %v341 = vunpack.c.l.bf16 %v339
    %v342 = vsub.f32 %v336, %v340
    %v343 = vsub.f32 %v337, %v341
    %344 = vmatpush.msra.mxu0 %v95
    %345 = vmatpush.msra.mxu0 %v94
    %346 = vmatpush.msra.mxu0 %v93
    %347 = vmatpush.msra.mxu0 %v92
    %348 = vmatpush.msra.mxu0 %v91
    %349 = vmatpush.msra.mxu0 %v90
    %350 = vmatpush.msra.mxu0 %v89
    %351 = vmatpush.msra.mxu0 %v88
    %352 = vmatpush.msra.mxu0 %v87
    %353 = vmatpush.msra.mxu0 %v86
    %354 = vmatpush.msra.mxu0 %v85
    %355 = vmatpush.msra.mxu0 %v84
    %356 = vmatpush.msra.mxu0 %v83
    %357 = vmatpush.msra.mxu0 %v82
    %358 = vmatpush.msra.mxu0 %v81
    %359 = vmatpush.msra.mxu0 %v80
    %360 = vmatmul.f32.gmra.mxu0 %v342
    %v361 = vpop.f32.mrf.mxu0
    %v362 = vadd.f32 0.0, %v361
    %363 = vmatmul.f32.gmra.mxu0 %v343
    %v364 = vpop.f32.mrf.mxu0
    %v365 = vadd.f32 0.0, %v364
    %366 = vdwg.mxu0
    %367 = vmatpush.msra.mxu0 %v95
    %368 = vmatpush.msra.mxu0 %v94
    %369 = vmatpush.msra.mxu0 %v93
    %370 = vmatpush.msra.mxu0 %v92
    %371 = vmatpush.msra.mxu0 %v91
    %372 = vmatpush.msra.mxu0 %v90
    %373 = vmatpush.msra.mxu0 %v89
    %374 = vmatpush.msra.mxu0 %v88
    %375 = vmatpush.msra.mxu0 %v87
    %376 = vmatpush.msra.mxu0 %v86
    %377 = vmatpush.msra.mxu0 %v85
    %378 = vmatpush.msra.mxu0 %v84
    %379 = vmatpush.msra.mxu0 %v83
    %380 = vmatpush.msra.mxu0 %v82
    %381 = vmatpush.msra.mxu0 %v81
    %382 = vmatpush.msra.mxu0 %v80
    %383 = vmatmul.f32.gmra.mxu0 %v340
    %v384 = vpop.f32.mrf.mxu0
    %v385 = vadd.f32 %v362, %v384
    %386 = vmatmul.f32.gmra.mxu0 %v341
    %v387 = vpop.f32.mrf.mxu0
    %v388 = vadd.f32 %v365, %v387
    %389 = vdwg.mxu0
    %v390 = vmul.f32 %v385, 0.0625
    %v391 = vmul.f32 %v388, 0.0625
    %v392 = vadd.f32 %v390, 1e-05
    %v393 = vadd.f32 %v391, 1e-05
    %v394 = vrsqrt.pop %v392
    %v395 = vmul.f32 %v394, %v392
    %v396 = vmul.f32 %v395, %v394
    %v397 = vmul.f32 0.5, %v396
    %v398 = vsub.f32 1.5, %v397
    %v399 = vmul.f32 %v394, %v398
    %vm400 = vweird.f32 %v392
    %vm401 = vweird.f32 %v394
    %vm402 = vmor %vm400, %vm401
    %v403 = vsel %vm402, %v394, %v399
    %v404 = vrsqrt.pop %v393
    %v405 = vmul.f32 %v404, %v393
    %v406 = vmul.f32 %v405, %v404
    %v407 = vmul.f32 0.5, %v406
    %v408 = vsub.f32 1.5, %v407
    %v409 = vmul.f32 %v404, %v408
    %vm410 = vweird.f32 %v393
    %vm411 = vweird.f32 %v404
    %vm412 = vmor %vm410, %vm411
    %v413 = vsel %vm412, %v404, %v409
    %v414 = vmul.f32 %v334, %v403
    %v415 = vmul.f32 %v335, %v413
    %v416 = vperm.slane %v79, 3
    %v417 = vmul.f32 %v414, %v416
    %v418 = vmul.f32 %v415, %v416
    %v419 = vperm.slane %v79, 4
    %v420 = vadd.f32 %v417, %v419
    %v421 = vadd.f32 %v418, %v419
    %v422 = vmax.f32 %v420, 0.0
    %v423 = vmax.f32 %v421, 0.0
    %424 = vst [vmem:[#allocation10] sm:$0xff] %v422
    %425 = vst [vmem:[#allocation10 + $0x8] sm:$0xff] %v423
    // Predicated region
    $region34: #{tpu_custom_call.1} parent=1 // pred_check
      _
    $region35: #{tpu_custom_call.1} parent=1 // pred_check_branch
      %427 = sbr.rel (0) target = $region37
    $region36: #{tpu_custom_call.1} parent=1 // pred_region
      %429 = vsyncadd [#allocation4], 0
      %s430 = sshll.u32 [#allocation10], 4
      %s431 = int_to_ptr.vmem [resolvable:$true] %s430
      %s432 = sshll.u32 %s4, 4
      %s433 = int_to_ptr.hbm [resolvable:$true] %s432
      %438 = dma.vmem_to_hbm [thread:$0]  %s431, 256, %s433, [#allocation4], 128, 128, 8
    $region37: #{tpu_custom_call.1} parent=1 // pred_fallthru
      _
    // Predicated region
    $region38: #{tpu_custom_call.1} parent=1 // pred_check
      _
    $region39: #{tpu_custom_call.1} parent=1 // pred_check_branch
      %440 = sbr.rel (0) target = $region41
    $region40: #{tpu_custom_call.1} parent=1 // pred_region
      %442 = dma.done [#allocation4], 256
    $region41: #{tpu_custom_call.1} parent=1 // pred_fallthru
      _
    %443 = vsyncpa [#allocation3], 1
    %444 = vsyncpa [#allocation6], 1
    %445 = vsyncpa [#allocation9], 1
    %446 = vsyncpa [#allocation4], 1

// kernel: tpu_custom_call.1
$region0: #{tpu_custom_call.1}
  #allocation0 [shape = 'u32[]', space=smem, size = 0x4, offset = 0x4, fixed_abs, tag = 'smem constant byte address 0x4 - core index']
  #allocation1 [shape = 'u32[72,128]{1,0:T(1,128)}', space=vmem, size = 0x9000, scoped, tag = 'internal scratch']
  %s0 = inlined_call_operand.hbm [shape: f32[16,128], index: 0, kind: input, shape index: {}]
  %s1 = inlined_call_operand.hbm [shape: f32[128,128], index: 1, kind: input, shape index: {}]
  %s2 = inlined_call_operand.hbm [shape: f32[8,128], index: 2, kind: input, shape index: {}]
  %s3 = inlined_call_operand.hbm [shape: f32[128,128], index: 3, kind: input, shape index: {}]
  %s4 = inlined_call_operand.hbm [shape: f32[16,128], index: 4, kind: output, shape index: {}]
  %s5 = sld [smem:[#allocation0]]
  $region42: #{tpu_custom_call.1} parent=0
    _
  %s7 = ssub.s32 1, %s5
  %s8 = scalar_select 0, %s7, %s5
  $region1: #{tpu_custom_call.1} parent=0
    #allocation2 [shape = 'u8[8192]{0}', space=vmem, size = 0x2000, scoped, tag = 'input window, operand 0, single buffered']
    #allocation3 [shape = 's32[1]{0}', space=sflag, size = 0x4, scoped, tag = 'scoped memory for tpu_custom_call.1']
    #allocation4 [shape = 's32[1]{0}', space=sflag, size = 0x4, scoped, tag = 'scoped memory for tpu_custom_call.1']
    #allocation5 [shape = 'u8[65536]{0}', space=vmem, size = 0x10000, scoped, tag = 'input window, operand 1, single buffered']
    #allocation6 [shape = 's32[1]{0}', space=sflag, size = 0x4, scoped, tag = 'scoped memory for tpu_custom_call.1']
    #allocation7 [shape = 'u8[4096]{0}', space=vmem, size = 0x1000, scoped, tag = 'input window, operand 2, single buffered']
    #allocation8 [shape = 'u8[65536]{0}', space=vmem, size = 0x10000, scoped, tag = 'input window, operand 3, single buffered']
    #allocation9 [shape = 's32[1]{0}', space=sflag, size = 0x4, scoped, tag = 'scoped memory for tpu_custom_call.1']
    #allocation10 [shape = 'u8[8192]{0}', space=vmem, size = 0x2000, scoped, tag = 'output window, operand 0, single buffered']
    %9 = vsyncpa [#allocation3], 0
    %10 = vsyncpa [#allocation6], 0
    %11 = vsyncpa [#allocation9], 0
    %12 = vsyncpa [#allocation4], 0
    // Predicated region
    $region2: #{tpu_custom_call.1} parent=1 // pred_check
      _
    $region3: #{tpu_custom_call.1} parent=1 // pred_check_branch
      %14 = sbr.rel (0) target = $region5
    $region4: #{tpu_custom_call.1} parent=1 // pred_region
      %16 = vsyncadd [#allocation3], 0
      %s17 = sshll.u32 %s0, 4
      %s18 = int_to_ptr.hbm [resolvable:$true] %s17
      %s19 = sshll.u32 [#allocation2], 4
      %s20 = int_to_ptr.vmem [resolvable:$true] %s19
      %25 = dma.hbm_to_vmem [thread:$0]  %s18, 256, %s20, [#allocation3], 128, 128, 8
    $region5: #{tpu_custom_call.1} parent=1 // pred_fallthru
      _
    // Predicated region
    $region6: #{tpu_custom_call.1} parent=1 // pred_check
      _
    $region7: #{tpu_custom_call.1} parent=1 // pred_check_branch
      %27 = sbr.rel (0) target = $region9
    $region8: #{tpu_custom_call.1} parent=1 // pred_region
      %29 = vsyncadd [#allocation6], 0
      %s30 = sshll.u32 %s1, 4
      %s31 = int_to_ptr.hbm [resolvable:$true] %s30
      %s32 = sshll.u32 [#allocation5], 4
      %s33 = int_to_ptr.vmem [resolvable:$true] %s32
      %38 = dma.hbm_to_vmem [thread:$0]  %s31, 2048, %s33, [#allocation6], 128, 128, 8
    $region9: #{tpu_custom_call.1} parent=1 // pred_fallthru
      _
    // Predicated region
    $region10: #{tpu_custom_call.1} parent=1 // pred_check
      _
    $region11: #{tpu_custom_call.1} parent=1 // pred_check_branch
      %40 = sbr.rel (0) target = $region13
    $region12: #{tpu_custom_call.1} parent=1 // pred_region
      %42 = vsyncadd [#allocation6], 0
      %s44 = sshll.u32 %s2, 4
      %s45 = int_to_ptr.hbm [resolvable:$true] %s44
      %s46 = sshll.u32 [#allocation7], 4
      %s47 = int_to_ptr.vmem [resolvable:$true] %s46
      %49 = dma.hbm_to_vmem [thread:$0]  %s45, 128, %s47, [#allocation6]
    $region13: #{tpu_custom_call.1} parent=1 // pred_fallthru
      _
    // Predicated region
    $region14: #{tpu_custom_call.1} parent=1 // pred_check
      _
    $region15: #{tpu_custom_call.1} parent=1 // pred_check_branch
      %51 = sbr.rel (0) target = $region17
    $region16: #{tpu_custom_call.1} parent=1 // pred_region
      %53 = vsyncadd [#allocation9], 0
      %s54 = sshll.u32 %s3, 4
      %s55 = int_to_ptr.hbm [resolvable:$true] %s54
      %s56 = sshll.u32 [#allocation8], 4
      %s57 = int_to_ptr.vmem [resolvable:$true] %s56
      %62 = dma.hbm_to_vmem [thread:$0]  %s55, 2048, %s57, [#allocation9], 128, 128, 8
    $region17: #{tpu_custom_call.1} parent=1 // pred_fallthru
      _
    // Predicated region
    $region18: #{tpu_custom_call.1} parent=1 // pred_check
      _
    $region19: #{tpu_custom_call.1} parent=1 // pred_check_branch
      %64 = sbr.rel (0) target = $region21
    $region20: #{tpu_custom_call.1} parent=1 // pred_region
      %66 = dma.done [#allocation3], 256
    $region21: #{tpu_custom_call.1} parent=1 // pred_fallthru
      _
    // Predicated region
    $region22: #{tpu_custom_call.1} parent=1 // pred_check
      _
    $region23: #{tpu_custom_call.1} parent=1 // pred_check_branch
      %68 = sbr.rel (0) target = $region25
    $region24: #{tpu_custom_call.1} parent=1 // pred_region
      %70 = dma.done [#allocation6], 2048
    $region25: #{tpu_custom_call.1} parent=1 // pred_fallthru
      _
    // Predicated region
    $region26: #{tpu_custom_call.1} parent=1 // pred_check
      _
    $region27: #{tpu_custom_call.1} parent=1 // pred_check_branch
      %72 = sbr.rel (0) target = $region29
    $region28: #{tpu_custom_call.1} parent=1 // pred_region
      %74 = dma.done [#allocation6], 128
    $region29: #{tpu_custom_call.1} parent=1 // pred_fallthru
      _
    // Predicated region
    $region30: #{tpu_custom_call.1} parent=1 // pred_check
      _
    $region31: #{tpu_custom_call.1} parent=1 // pred_check_branch
      %76 = sbr.rel (0) target = $region33
    $region32: #{tpu_custom_call.1} parent=1 // pred_region
      %78 = dma.done [#allocation9], 2048
    $region33: #{tpu_custom_call.1} parent=1 // pred_fallthru
      _
    %v79 = vld [vmem:[#allocation7] sm:$0xff]
    %v80 = vld [vmem:[#allocation8] sm:$0xff]
    %v81 = vld [vmem:[#allocation8 + $0x8] sm:$0xff]
    %v82 = vld [vmem:[#allocation8 + $0x10] sm:$0xff]
    %v83 = vld [vmem:[#allocation8 + $0x18] sm:$0xff]
    %v84 = vld [vmem:[#allocation8 + $0x20] sm:$0xff]
    %v85 = vld [vmem:[#allocation8 + $0x28] sm:$0xff]
    %v86 = vld [vmem:[#allocation8 + $0x30] sm:$0xff]
    %v87 = vld [vmem:[#allocation8 + $0x38] sm:$0xff]
    %v88 = vld [vmem:[#allocation8 + $0x40] sm:$0xff]
    %v89 = vld [vmem:[#allocation8 + $0x48] sm:$0xff]
    %v90 = vld [vmem:[#allocation8 + $0x50] sm:$0xff]
    %v91 = vld [vmem:[#allocation8 + $0x58] sm:$0xff]
    %v92 = vld [vmem:[#allocation8 + $0x60] sm:$0xff]
    %v93 = vld [vmem:[#allocation8 + $0x68] sm:$0xff]
    %v94 = vld [vmem:[#allocation8 + $0x70] sm:$0xff]
    %v95 = vld [vmem:[#allocation8 + $0x78] sm:$0xff]
    %v96 = vld [vmem:[#allocation2] sm:$0xff]
    %v97 = vld [vmem:[#allocation2 + $0x8] sm:$0xff]
    %v98 = vpack.c.bf16 %v96, %v96
    %v99 = vpack.c.bf16 %v97, %v97
    %v100 = vunpack.c.l.bf16 %v98
    %v101 = vunpack.c.l.bf16 %v99
    %v102 = vsub.f32 %v96, %v100
    %v103 = vsub.f32 %v97, %v101
    %104 = vmatpush.msra.mxu0 %v95
    %105 = vmatpush.msra.mxu0 %v94
    %106 = vmatpush.msra.mxu0 %v93
    %107 = vmatpush.msra.mxu0 %v92
    %108 = vmatpush.msra.mxu0 %v91
    %109 = vmatpush.msra.mxu0 %v90
    %110 = vmatpush.msra.mxu0 %v89
    %111 = vmatpush.msra.mxu0 %v88
    %112 = vmatpush.msra.mxu0 %v87
    %113 = vmatpush.msra.mxu0 %v86
    %114 = vmatpush.msra.mxu0 %v85
    %115 = vmatpush.msra.mxu0 %v84
    %116 = vmatpush.msra.mxu0 %v83
    %117 = vmatpush.msra.mxu0 %v82
    %118 = vmatpush.msra.mxu0 %v81
    %119 = vmatpush.msra.mxu0 %v80
    %120 = vmatmul.f32.gmra.mxu0 %v102
    %v121 = vpop.f32.mrf.mxu0
    %v122 = vadd.f32 0.0, %v121
    %123 = vmatmul.f32.gmra.mxu0 %v103
    %v124 = vpop.f32.mrf.mxu0
    %v125 = vadd.f32 0.0, %v124
    %126 = vdwg.mxu0
    %127 = vmatpush.msra.mxu0 %v95
    %128 = vmatpush.msra.mxu0 %v94
    %129 = vmatpush.msra.mxu0 %v93
    %130 = vmatpush.msra.mxu0 %v92
    %131 = vmatpush.msra.mxu0 %v91
    %132 = vmatpush.msra.mxu0 %v90
    %133 = vmatpush.msra.mxu0 %v89
    %134 = vmatpush.msra.mxu0 %v88
    %135 = vmatpush.msra.mxu0 %v87
    %136 = vmatpush.msra.mxu0 %v86
    %137 = vmatpush.msra.mxu0 %v85
    %138 = vmatpush.msra.mxu0 %v84
    %139 = vmatpush.msra.mxu0 %v83
    %140 = vmatpush.msra.mxu0 %v82
    %141 = vmatpush.msra.mxu0 %v81
    %142 = vmatpush.msra.mxu0 %v80
    %143 = vmatmul.f32.gmra.mxu0 %v100
    %v144 = vpop.f32.mrf.mxu0
    %v145 = vadd.f32 %v122, %v144
    %146 = vmatmul.f32.gmra.mxu0 %v101
    %v147 = vpop.f32.mrf.mxu0
    %v148 = vadd.f32 %v125, %v147
    %149 = vdwg.mxu0
    %v150 = vmul.f32 %v145, 0.0625
    %v151 = vmul.f32 %v148, 0.0625
    %v152 = vsub.f32 %v96, %v150
    %v153 = vsub.f32 %v97, %v151
    %v154 = vmul.f32 %v152, %v152
    %v155 = vmul.f32 %v153, %v153
    %v156 = vpack.c.bf16 %v154, %v154
    %v157 = vpack.c.bf16 %v155, %v155
    %v158 = vunpack.c.l.bf16 %v156
    %v159 = vunpack.c.l.bf16 %v157
    %v160 = vsub.f32 %v154, %v158
    %v161 = vsub.f32 %v155, %v159
    %162 = vmatpush.msra.mxu0 %v95
    %163 = vmatpush.msra.mxu0 %v94
    %164 = vmatpush.msra.mxu0 %v93
    %165 = vmatpush.msra.mxu0 %v92
    %166 = vmatpush.msra.mxu0 %v91
    %167 = vmatpush.msra.mxu0 %v90
    %168 = vmatpush.msra.mxu0 %v89
    %169 = vmatpush.msra.mxu0 %v88
    %170 = vmatpush.msra.mxu0 %v87
    %171 = vmatpush.msra.mxu0 %v86
    %172 = vmatpush.msra.mxu0 %v85
    %173 = vmatpush.msra.mxu0 %v84
    %174 = vmatpush.msra.mxu0 %v83
    %175 = vmatpush.msra.mxu0 %v82
    %176 = vmatpush.msra.mxu0 %v81
    %177 = vmatpush.msra.mxu0 %v80
    %178 = vmatmul.f32.gmra.mxu0 %v160
    %v179 = vpop.f32.mrf.mxu0
    %v180 = vadd.f32 0.0, %v179
    %181 = vmatmul.f32.gmra.mxu0 %v161
    %v182 = vpop.f32.mrf.mxu0
    %v183 = vadd.f32 0.0, %v182
    %184 = vdwg.mxu0
    %185 = vmatpush.msra.mxu0 %v95
    %186 = vmatpush.msra.mxu0 %v94
    %187 = vmatpush.msra.mxu0 %v93
    %188 = vmatpush.msra.mxu0 %v92
    %189 = vmatpush.msra.mxu0 %v91
    %190 = vmatpush.msra.mxu0 %v90
    %191 = vmatpush.msra.mxu0 %v89
    %192 = vmatpush.msra.mxu0 %v88
    %193 = vmatpush.msra.mxu0 %v87
    %194 = vmatpush.msra.mxu0 %v86
    %195 = vmatpush.msra.mxu0 %v85
    %196 = vmatpush.msra.mxu0 %v84
    %197 = vmatpush.msra.mxu0 %v83
    %198 = vmatpush.msra.mxu0 %v82
    %199 = vmatpush.msra.mxu0 %v81
    %200 = vmatpush.msra.mxu0 %v80
    %201 = vmatmul.f32.gmra.mxu0 %v158
    %v202 = vpop.f32.mrf.mxu0
    %v203 = vadd.f32 %v180, %v202
    %204 = vmatmul.f32.gmra.mxu0 %v159
    %v205 = vpop.f32.mrf.mxu0
    %v206 = vadd.f32 %v183, %v205
    %207 = vdwg.mxu0
    %v208 = vmul.f32 %v203, 0.0625
    %v209 = vmul.f32 %v206, 0.0625
    %v210 = vadd.f32 %v208, 1e-05
    %v211 = vadd.f32 %v209, 1e-05
    %v212 = vrsqrt.pop %v210
    %v213 = vmul.f32 %v212, %v210
    %v214 = vmul.f32 %v213, %v212
    %v215 = vmul.f32 0.5, %v214
    %v216 = vsub.f32 1.5, %v215
    %v217 = vmul.f32 %v212, %v216
    %vm218 = vweird.f32 %v210
    %vm219 = vweird.f32 %v212
    %vm220 = vmor %vm218, %vm219
    %v221 = vsel %vm220, %v212, %v217
    %v222 = vrsqrt.pop %v211
    %v223 = vmul.f32 %v222, %v211
    %v224 = vmul.f32 %v223, %v222
    %v225 = vmul.f32 0.5, %v224
    %v226 = vsub.f32 1.5, %v225
    %v227 = vmul.f32 %v222, %v226
    %vm228 = vweird.f32 %v211
    %vm229 = vweird.f32 %v222
    %vm230 = vmor %vm228, %vm229
    %v231 = vsel %vm230, %v222, %v227
    %v232 = vmul.f32 %v152, %v221
    %v233 = vmul.f32 %v153, %v231
    %v234 = vperm.slane %v79, 1
    %v235 = vmul.f32 %v232, %v234
    %v236 = vmul.f32 %v233, %v234
    %v237 = vperm.slane %v79, 2
    %v238 = vadd.f32 %v235, %v237
    %v239 = vadd.f32 %v236, %v237
    %v240 = vld [vmem:[#allocation5] sm:$0xff]
    %v241 = vld [vmem:[#allocation5 + $0x8] sm:$0xff]
    %v242 = vld [vmem:[#allocation5 + $0x10] sm:$0xff]
    %v243 = vld [vmem:[#allocation5 + $0x18] sm:$0xff]
    %v244 = vld [vmem:[#allocation5 + $0x20] sm:$0xff]
    %v245 = vld [vmem:[#allocation5 + $0x28] sm:$0xff]
    %v246 = vld [vmem:[#allocation5 + $0x30] sm:$0xff]
    %v247 = vld [vmem:[#allocation5 + $0x38] sm:$0xff]
    %v248 = vld [vmem:[#allocation5 + $0x40] sm:$0xff]
    %v249 = vld [vmem:[#allocation5 + $0x48] sm:$0xff]
    %v250 = vld [vmem:[#allocation5 + $0x50] sm:$0xff]
    %v251 = vld [vmem:[#allocation5 + $0x58] sm:$0xff]
    %v252 = vld [vmem:[#allocation5 + $0x60] sm:$0xff]
    %v253 = vld [vmem:[#allocation5 + $0x68] sm:$0xff]
    %v254 = vld [vmem:[#allocation5 + $0x70] sm:$0xff]
    %v255 = vld [vmem:[#allocation5 + $0x78] sm:$0xff]
    %v256 = vperm.slane %v79, 0
    %257 = vmatpush.msra.mxu0 %v255
    %258 = vmatpush.msra.mxu0 %v254
    %259 = vmatpush.msra.mxu0 %v253
    %260 = vmatpush.msra.mxu0 %v252
    %261 = vmatpush.msra.mxu0 %v251
    %262 = vmatpush.msra.mxu0 %v250
    %263 = vmatpush.msra.mxu0 %v249
    %264 = vmatpush.msra.mxu0 %v248
    %265 = vmatpush.msra.mxu0 %v247
    %266 = vmatpush.msra.mxu0 %v246
    %267 = vmatpush.msra.mxu0 %v245
    %268 = vmatpush.msra.mxu0 %v244
    %269 = vmatpush.msra.mxu0 %v243
    %270 = vmatpush.msra.mxu0 %v242
    %271 = vmatpush.msra.mxu0 %v241
    %272 = vmatpush.msra.mxu0 %v240
    %273 = vmatmul.f32.gmra.mxu0 %v238
    %v274 = vpop.f32.mrf.mxu0
    %v275 = vadd.f32 %v256, %v274
    %276 = vmatmul.f32.gmra.mxu0 %v239
    %v277 = vpop.f32.mrf.mxu0
    %v278 = vadd.f32 %v256, %v277
    %279 = vdwg.mxu0
    %v280 = vpack.c.bf16 %v275, %v275
    %v281 = vpack.c.bf16 %v278, %v278
    %v282 = vunpack.c.l.bf16 %v280
    %v283 = vunpack.c.l.bf16 %v281
    %v284 = vsub.f32 %v275, %v282
    %v285 = vsub.f32 %v278, %v283
    %286 = vmatpush.msra.mxu0 %v95
    %287 = vmatpush.msra.mxu0 %v94
    %288 = vmatpush.msra.mxu0 %v93
    %289 = vmatpush.msra.mxu0 %v92
    %290 = vmatpush.msra.mxu0 %v91
    %291 = vmatpush.msra.mxu0 %v90
    %292 = vmatpush.msra.mxu0 %v89
    %293 = vmatpush.msra.mxu0 %v88
    %294 = vmatpush.msra.mxu0 %v87
    %295 = vmatpush.msra.mxu0 %v86
    %296 = vmatpush.msra.mxu0 %v85
    %297 = vmatpush.msra.mxu0 %v84
    %298 = vmatpush.msra.mxu0 %v83
    %299 = vmatpush.msra.mxu0 %v82
    %300 = vmatpush.msra.mxu0 %v81
    %301 = vmatpush.msra.mxu0 %v80
    %302 = vmatmul.f32.gmra.mxu0 %v284
    %v303 = vpop.f32.mrf.mxu0
    %v304 = vadd.f32 0.0, %v303
    %305 = vmatmul.f32.gmra.mxu0 %v285
    %v306 = vpop.f32.mrf.mxu0
    %v307 = vadd.f32 0.0, %v306
    %308 = vdwg.mxu0
    %309 = vmatpush.msra.mxu0 %v95
    %310 = vmatpush.msra.mxu0 %v94
    %311 = vmatpush.msra.mxu0 %v93
    %312 = vmatpush.msra.mxu0 %v92
    %313 = vmatpush.msra.mxu0 %v91
    %314 = vmatpush.msra.mxu0 %v90
    %315 = vmatpush.msra.mxu0 %v89
    %316 = vmatpush.msra.mxu0 %v88
    %317 = vmatpush.msra.mxu0 %v87
    %318 = vmatpush.msra.mxu0 %v86
    %319 = vmatpush.msra.mxu0 %v85
    %320 = vmatpush.msra.mxu0 %v84
    %321 = vmatpush.msra.mxu0 %v83
    %322 = vmatpush.msra.mxu0 %v82
    %323 = vmatpush.msra.mxu0 %v81
    %324 = vmatpush.msra.mxu0 %v80
    %325 = vmatmul.f32.gmra.mxu0 %v282
    %v326 = vpop.f32.mrf.mxu0
    %v327 = vadd.f32 %v304, %v326
    %328 = vmatmul.f32.gmra.mxu0 %v283
    %v329 = vpop.f32.mrf.mxu0
    %v330 = vadd.f32 %v307, %v329
    %331 = vdwg.mxu0
    %v332 = vmul.f32 %v327, 0.0625
    %v333 = vmul.f32 %v330, 0.0625
    %v334 = vsub.f32 %v275, %v332
    %v335 = vsub.f32 %v278, %v333
    %v336 = vmul.f32 %v334, %v334
    %v337 = vmul.f32 %v335, %v335
    %v338 = vpack.c.bf16 %v336, %v336
    %v339 = vpack.c.bf16 %v337, %v337
    %v340 = vunpack.c.l.bf16 %v338
    %v341 = vunpack.c.l.bf16 %v339
    %v342 = vsub.f32 %v336, %v340
    %v343 = vsub.f32 %v337, %v341
    %344 = vmatpush.msra.mxu0 %v95
    %345 = vmatpush.msra.mxu0 %v94
    %346 = vmatpush.msra.mxu0 %v93
    %347 = vmatpush.msra.mxu0 %v92
    %348 = vmatpush.msra.mxu0 %v91
    %349 = vmatpush.msra.mxu0 %v90
    %350 = vmatpush.msra.mxu0 %v89
    %351 = vmatpush.msra.mxu0 %v88
    %352 = vmatpush.msra.mxu0 %v87
    %353 = vmatpush.msra.mxu0 %v86
    %354 = vmatpush.msra.mxu0 %v85
    %355 = vmatpush.msra.mxu0 %v84
    %356 = vmatpush.msra.mxu0 %v83
    %357 = vmatpush.msra.mxu0 %v82
    %358 = vmatpush.msra.mxu0 %v81
    %359 = vmatpush.msra.mxu0 %v80
    %360 = vmatmul.f32.gmra.mxu0 %v342
    %v361 = vpop.f32.mrf.mxu0
    %v362 = vadd.f32 0.0, %v361
    %363 = vmatmul.f32.gmra.mxu0 %v343
    %v364 = vpop.f32.mrf.mxu0
    %v365 = vadd.f32 0.0, %v364
    %366 = vdwg.mxu0
    %367 = vmatpush.msra.mxu0 %v95
    %368 = vmatpush.msra.mxu0 %v94
    %369 = vmatpush.msra.mxu0 %v93
    %370 = vmatpush.msra.mxu0 %v92
    %371 = vmatpush.msra.mxu0 %v91
    %372 = vmatpush.msra.mxu0 %v90
    %373 = vmatpush.msra.mxu0 %v89
    %374 = vmatpush.msra.mxu0 %v88
    %375 = vmatpush.msra.mxu0 %v87
    %376 = vmatpush.msra.mxu0 %v86
    %377 = vmatpush.msra.mxu0 %v85
    %378 = vmatpush.msra.mxu0 %v84
    %379 = vmatpush.msra.mxu0 %v83
    %380 = vmatpush.msra.mxu0 %v82
    %381 = vmatpush.msra.mxu0 %v81
    %382 = vmatpush.msra.mxu0 %v80
    %383 = vmatmul.f32.gmra.mxu0 %v340
    %v384 = vpop.f32.mrf.mxu0
    %v385 = vadd.f32 %v362, %v384
    %386 = vmatmul.f32.gmra.mxu0 %v341
    %v387 = vpop.f32.mrf.mxu0
    %v388 = vadd.f32 %v365, %v387
    %389 = vdwg.mxu0
    %v390 = vmul.f32 %v385, 0.0625
    %v391 = vmul.f32 %v388, 0.0625
    %v392 = vadd.f32 %v390, 1e-05
    %v393 = vadd.f32 %v391, 1e-05
    %v394 = vrsqrt.pop %v392
    %v395 = vmul.f32 %v394, %v392
    %v396 = vmul.f32 %v395, %v394
    %v397 = vmul.f32 0.5, %v396
    %v398 = vsub.f32 1.5, %v397
    %v399 = vmul.f32 %v394, %v398
    %vm400 = vweird.f32 %v392
    %vm401 = vweird.f32 %v394
    %vm402 = vmor %vm400, %vm401
    %v403 = vsel %vm402, %v394, %v399
    %v404 = vrsqrt.pop %v393
    %v405 = vmul.f32 %v404, %v393
    %v406 = vmul.f32 %v405, %v404
    %v407 = vmul.f32 0.5, %v406
    %v408 = vsub.f32 1.5, %v407
    %v409 = vmul.f32 %v404, %v408
    %vm410 = vweird.f32 %v393
    %vm411 = vweird.f32 %v404
    %vm412 = vmor %vm410, %vm411
    %v413 = vsel %vm412, %v404, %v409
    %v414 = vmul.f32 %v334, %v403
    %v415 = vmul.f32 %v335, %v413
    %v416 = vperm.slane %v79, 3
    %v417 = vmul.f32 %v414, %v416
    %v418 = vmul.f32 %v415, %v416
    %v419 = vperm.slane %v79, 4
    %v420 = vadd.f32 %v417, %v419
    %v421 = vadd.f32 %v418, %v419
    %v422 = vmax.f32 %v420, 0.0
    %v423 = vmax.f32 %v421, 0.0
    %424 = vst [vmem:[#allocation10] sm:$0xff] %v422
    %425 = vst [vmem:[#allocation10 + $0x8] sm:$0xff] %v423
    // Predicated region
    $region34: #{tpu_custom_call.1} parent=1 // pred_check
      _
    $region35: #{tpu_custom_call.1} parent=1 // pred_check_branch
      %427 = sbr.rel (0) target = $region37
    $region36: #{tpu_custom_call.1} parent=1 // pred_region
      %429 = vsyncadd [#allocation4], 0
      %s430 = sshll.u32 [#allocation10], 4
      %s431 = int_to_ptr.vmem [resolvable:$true] %s430
      %s432 = sshll.u32 %s4, 4
      %s433 = int_to_ptr.hbm [resolvable:$true] %s432
      %438 = dma.vmem_to_hbm [thread:$0]  %s431, 256, %s433, [#allocation4], 128, 128, 8
    $region37: #{tpu_custom_call.1} parent=1 // pred_fallthru
      _
    // Predicated region
    $region38: #{tpu_custom_call.1} parent=1 // pred_check
      _
    $region39: #{tpu_custom_call.1} parent=1 // pred_check_branch
      %440 = sbr.rel (0) target = $region41
    $region40: #{tpu_custom_call.1} parent=1 // pred_region
      %442 = dma.done [#allocation4], 256
    $region41: #{tpu_custom_call.1} parent=1 // pred_fallthru
      _
    %443 = vsyncpa [#allocation3], 1
    %444 = vsyncpa [#allocation6], 1
    %445 = vsyncpa [#allocation9], 1
    %446 = vsyncpa [#allocation4], 1

</llo_original>
